<compile_context>
chip_gen: v5e
topology: v5e:2x2
jax: 0.10.0
libtpu: 0.0.40
codegen_flags: <defaults>
</compile_context>

<pallas_src>
import functools
import math

import numpy as np
import jax
import jax.numpy as jnp
from jax.experimental import pallas as pl
from jax.experimental.pallas import tpu as pltpu

# ----------------------------------------------------------------------------
# Scaled-down hyper-parameters (same structure as the reference module)
# ----------------------------------------------------------------------------
EMB = 128              # fim_embed_dim      (512 in the reference)
NUM_HEADS = 4          # fim_num_heads      (16 in the reference)
HEAD_DIM = EMB // NUM_HEADS
SCALE = HEAD_DIM ** -0.5
GRID = 8               # sqrt(#image tokens) (14 in the reference)
NUM_TOKENS = GRID * GRID
DEC0 = 16              # first decoder resolution (24 in the reference)
DEC_CH = 64            # decoder channels    (256 in the reference)
MLP_RATIO = 4          # CrossAttentionBlock mlp ratio
ITER_MLP_FACTOR = 16   # IterativeAdaptation mlp factor
NUM_OBJECTS = 3
KERNEL_DIM = 3
GN_GROUPS = 8


def _round_up(x, m):
    return ((x + m - 1) // m) * m


# ----------------------------------------------------------------------------
# Linear: (M, K) @ (K, N) + b  --  bf16 MXU inputs, f32 accumulation
# ----------------------------------------------------------------------------
def _linear_kernel(x_ref, w_ref, b_ref, o_ref):
    o_ref[...] = (jnp.dot(x_ref[...], w_ref[...],
                          preferred_element_type=jnp.float32)
                  + b_ref[...]).astype(o_ref.dtype)


@functools.lru_cache(maxsize=None)
def _linear_call(Mp, K, N, tm, tn, out_dtype):
    f = pl.pallas_call(
        _linear_kernel,
        out_shape=jax.ShapeDtypeStruct((Mp, N), out_dtype),
        grid=(Mp // tm, N // tn),
        in_specs=[pl.BlockSpec((tm, K), lambda i, j: (i, 0)),
                  pl.BlockSpec((K, tn), lambda i, j: (0, j)),
                  pl.BlockSpec((1, tn), lambda i, j: (0, j))],
        out_specs=pl.BlockSpec((tm, tn), lambda i, j: (i, j)),
        compiler_params=pltpu.CompilerParams(
            dimension_semantics=("parallel", "parallel")),
    )
    return jax.jit(f)


def linear(x, w, b, out_dtype=jnp.float32):
    """x: (..., K) @ w: (K, N) + b: (N,) -> (..., N)."""
    K, N = w.shape
    n_out = N
    if N < 128:                      # lane-pad tiny outputs (unused in this model)
        w = jnp.pad(w, ((0, 0), (0, 128 - N)))
        b = jnp.pad(b, ((0, 128 - N),))
        N = 128
    lead = x.shape[:-1]
    x2 = x.reshape(-1, K)
    M = x2.shape[0]
    Mp = _round_up(M, 16)            # bf16 packs 16 rows per sublane group
    # VMEM-aware M tile: keep the x tile <= ~4 MiB bf16, cap at 2048 rows.
    tm_cap = min(2048, max(256, ((4 * 1024 * 1024) // (2 * K)) // 16 * 16))
    if Mp <= tm_cap:
        tm = Mp
    else:
        tm = tm_cap
        Mp = _round_up(M, tm)
    if Mp != M:
        x2 = jnp.pad(x2, ((0, Mp - M), (0, 0)))
    if N <= 512:
        tn = N
    elif N % 512 == 0:
        tn = 512
    elif N % 256 == 0:
        tn = 256
    elif N % 128 == 0:
        tn = 128
    else:
        tn = N
    out = _linear_call(Mp, K, N, tm, tn, out_dtype)(
        x2.astype(jnp.bfloat16), w.astype(jnp.bfloat16),
        b.reshape(1, N).astype(jnp.float32))
    return out[:M, :n_out].reshape(*lead, n_out)


# ----------------------------------------------------------------------------
# Scaled-dot-product attention: lane-dense (B, L, H*d) blocks, heads inside
# ----------------------------------------------------------------------------
def _attn_kernel(q_ref, k_ref, v_ref, o_ref, *, scale, num_heads, head_dim):
    d = head_dim
    qa = q_ref[0]                                           # (Lq, H*d) bf16
    ka = k_ref[0]                                           # (Lk, H*d) bf16
    va = v_ref[0]                                           # (Lk, H*d) bf16
    for h in range(num_heads):
        q = qa[:, h * d:(h + 1) * d]
        k = ka[:, h * d:(h + 1) * d]
        v = va[:, h * d:(h + 1) * d]
        s = jax.lax.dot_general(q, k, (((1,), (1,)), ((), ())),
                                preferred_element_type=jnp.float32) * scale
        s = s - jnp.max(s, axis=-1, keepdims=True)
        p = jnp.exp(s)
        p = p * pl.reciprocal(jnp.sum(p, axis=-1, keepdims=True), approx=True)
        o_ref[0, :, h * d:(h + 1) * d] = jnp.dot(
            p.astype(v.dtype), v,
            preferred_element_type=jnp.float32).astype(o_ref.dtype)


@functools.lru_cache(maxsize=None)
def _attn_call(B, Lq, Lk, C, H, d, scale):
    f = pl.pallas_call(
        functools.partial(_attn_kernel, scale=scale, num_heads=H, head_dim=d),
        out_shape=jax.ShapeDtypeStruct((B, Lq, C), jnp.bfloat16),
        grid=(B,),
        in_specs=[pl.BlockSpec((1, Lq, C), lambda b: (b, 0, 0)),
                  pl.BlockSpec((1, Lk, C), lambda b: (b, 0, 0)),
                  pl.BlockSpec((1, Lk, C), lambda b: (b, 0, 0))],
        out_specs=pl.BlockSpec((1, Lq, C), lambda b: (b, 0, 0)),
        compiler_params=pltpu.CompilerParams(
            dimension_semantics=("parallel",)),
    )
    return jax.jit(f)


def sdpa(q, k, v, scale):
    """q: (B, Lq, C); k, v: (B, Lk, C) -> (B, Lq, C) bf16, heads on lanes."""
    B, Lq, C = q.shape
    Lk = k.shape[1]
    return _attn_call(B, Lq, Lk, C, NUM_HEADS, HEAD_DIM, float(scale))(
        q.astype(jnp.bfloat16), k.astype(jnp.bfloat16), v.astype(jnp.bfloat16))


# ----------------------------------------------------------------------------
# LayerNorm
# ----------------------------------------------------------------------------
def _ln_kernel(x_ref, w_ref, b_ref, o_ref, *, eps):
    x = x_ref[...]
    mu = jnp.mean(x, axis=-1, keepdims=True)
    xc = x - mu
    var = jnp.mean(xc * xc, axis=-1, keepdims=True)
    o_ref[...] = xc * jax.lax.rsqrt(var + eps) * w_ref[...] + b_ref[...]


@functools.lru_cache(maxsize=None)
def _ln_call(Mp, tm, C, eps):
    f = pl.pallas_call(
        functools.partial(_ln_kernel, eps=eps),
        out_shape=jax.ShapeDtypeStruct((Mp, C), jnp.float32),
        grid=(Mp // tm,),
        in_specs=[pl.BlockSpec((tm, C), lambda i: (i, 0)),
                  pl.BlockSpec((1, C), lambda i: (0, 0)),
                  pl.BlockSpec((1, C), lambda i: (0, 0))],
        out_specs=pl.BlockSpec((tm, C), lambda i: (i, 0)),
        compiler_params=pltpu.CompilerParams(
            dimension_semantics=("parallel",)),
    )
    return jax.jit(f)


def layer_norm(x, wb, eps):
    w, b = wb
    C = x.shape[-1]
    x2 = x.reshape(-1, C).astype(jnp.float32)
    M = x2.shape[0]
    Mp = _round_up(M, 8)
    tm = Mp if Mp <= 1024 else 256
    Mp = _round_up(Mp, tm)
    if Mp != M:
        x2 = jnp.pad(x2, ((0, Mp - M), (0, 0)))
    out = _ln_call(Mp, tm, C, float(eps))(x2, w.reshape(1, C), b.reshape(1, C))
    return out[:M].reshape(x.shape)


# ----------------------------------------------------------------------------
# Fused decoder head: 3x3 conv + GroupNorm + ReLU (+ optional final 1x1 -> 1ch)
# One grid step per batch, full map resident in a VMEM f32 scratch, conv done
# in row chunks (bounded vreg pressure), GN stats accumulated during the conv
# pass -- no separate GN / ReLU / 1x1 HBM round trips, no halo duplication.
# ----------------------------------------------------------------------------
def _conv_gn_stats(x_ref, w_ref, b_ref, g_ref, gw_ref, gb_ref, y_ref, *,
                   H, W, cin, cout, TH, eps, inv_cnt):
    nch = H // TH

    def body(t, carry):
        s1, s2 = carry
        r0 = pl.multiple_of(t * TH, TH)
        acc = jnp.zeros((TH * W, cout), jnp.float32) + b_ref[...]
        for dy in range(3):
            band = x_ref[0, pl.ds(r0 + dy, TH), :, :]        # (TH, W+2, cin)
            for dx in range(3):
                patch = band[:, dx:dx + W, :].reshape(TH * W, cin)
                acc = acc + jnp.dot(patch, w_ref[dy, dx],
                                    preferred_element_type=jnp.float32)
        y_ref[pl.ds(r0, TH)] = acc.reshape(TH, W, cout)
        s1 = s1 + jnp.sum(acc, axis=0, keepdims=True)
        s2 = s2 + jnp.sum(acc * acc, axis=0, keepdims=True)
        return s1, s2

    s1, s2 = jax.lax.fori_loop(
        0, nch, body, (jnp.zeros((1, cout), jnp.float32),
                       jnp.zeros((1, cout), jnp.float32)))
    # Per-group stats broadcast back to channels via a block-diagonal matmul.
    gm = jnp.dot(s1, g_ref[...], preferred_element_type=jnp.float32) * inv_cnt
    gs = jnp.dot(s2, g_ref[...], preferred_element_type=jnp.float32) * inv_cnt
    var = jnp.maximum(gs - gm * gm, 0.0)
    scale = gw_ref[...] * jax.lax.rsqrt(var + eps)
    shift = gb_ref[...] - gm * scale
    return scale, shift


def _dec_head_kernel(x_ref, w_ref, b_ref, g_ref, gw_ref, gb_ref, o_ref, y_ref,
                     *, H, W, cin, cout, TH, eps, inv_cnt):
    scale, shift = _conv_gn_stats(x_ref, w_ref, b_ref, g_ref, gw_ref, gb_ref,
                                  y_ref, H=H, W=W, cin=cin, cout=cout, TH=TH,
                                  eps=eps, inv_cnt=inv_cnt)

    def body(t, carry):
        r0 = pl.multiple_of(t * TH, TH)
        y = y_ref[pl.ds(r0, TH)]                             # (TH, W, cout) f32
        z = jnp.maximum(y * scale + shift, 0.0)
        o_ref[0, pl.ds(r0, TH)] = z.astype(o_ref.dtype)
        return carry

    jax.lax.fori_loop(0, H // TH, body, 0)


def _dec_head_final_kernel(x_ref, w_ref, b_ref, g_ref, gw_ref, gb_ref,
                           w1_ref, b1_ref, o_ref, y_ref,
                           *, H, W, cin, cout, TH, eps, inv_cnt):
    scale, shift = _conv_gn_stats(x_ref, w_ref, b_ref, g_ref, gw_ref, gb_ref,
                                  y_ref, H=H, W=W, cin=cin, cout=cout, TH=TH,
                                  eps=eps, inv_cnt=inv_cnt)

    def body(t, carry):
        r0 = pl.multiple_of(t * TH, TH)
        y = y_ref[pl.ds(r0, TH)]                             # (TH, W, cout) f32
        z = jnp.maximum(y * scale + shift, 0.0)
        dmap = jnp.sum(z * w1_ref[...], axis=-1) + b1_ref[...]   # (TH, W)
        o_ref[0, pl.ds(r0, TH), :] = dmap
        return carry

    jax.lax.fori_loop(0, H // TH, body, 0)


@functools.lru_cache(maxsize=None)
def _dec_head_call(B, H, W, cin, cout, TH, groups, final):
    eps = 1e-5
    inv_cnt = 1.0 / float(H * W * (cout // groups))
    kw = dict(H=H, W=W, cin=cin, cout=cout, TH=TH, eps=eps, inv_cnt=inv_cnt)
    in_specs = [
        pl.BlockSpec((1, H + 2, W + 2, cin), lambda b: (b, 0, 0, 0)),
        pl.BlockSpec((3, 3, cin, cout), lambda b: (0, 0, 0, 0)),
        pl.BlockSpec((1, cout), lambda b: (0, 0)),
        pl.BlockSpec((cout, cout), lambda b: (0, 0)),
        pl.BlockSpec((1, cout), lambda b: (0, 0)),
        pl.BlockSpec((1, cout), lambda b: (0, 0)),
    ]
    if final:
        kernel = functools.partial(_dec_head_final_kernel, **kw)
        in_specs = in_specs + [pl.BlockSpec((1, cout), lambda b: (0, 0)),
                               pl.BlockSpec((1, 1), lambda b: (0, 0))]
        out_shape = jax.ShapeDtypeStruct((B, H, W), jnp.float32)
        out_spec = pl.BlockSpec((1, H, W), lambda b: (b, 0, 0))
    else:
        kernel = functools.partial(_dec_head_kernel, **kw)
        out_shape = jax.ShapeDtypeStruct((B, H, W, cout), jnp.bfloat16)
        out_spec = pl.BlockSpec((1, H, W, cout), lambda b: (b, 0, 0, 0))
    f = pl.pallas_call(
        kernel,
        out_shape=out_shape,
        grid=(B,),
        in_specs=in_specs,
        out_specs=out_spec,
        scratch_shapes=[pltpu.VMEM((H, W, cout), jnp.float32)],
        compiler_params=pltpu.CompilerParams(
            dimension_semantics=("parallel",),
            vmem_limit_bytes=48 * 1024 * 1024),
    )
    return jax.jit(f)


def dec_head(x, conv_wb, gn_wb, final=None, groups=GN_GROUPS):
    """x: (B,H,W,Cin) -> GN(ReLU(conv3x3)) (bf16) or density map (B,H,W) f32."""
    w, b = conv_wb
    gw, gb = gn_wb
    B, H, W, cin = x.shape
    cout = w.shape[-1]
    TH = max(1, min(H, 512 // W))        # row chunk so TH*W*Cout*4B stays small
    while H % TH:
        TH -= 1
    xp = jnp.pad(x, ((0, 0), (1, 1), (1, 1), (0, 0))).astype(jnp.bfloat16)
    cpg = cout // groups
    gmat = jnp.asarray(np.kron(np.eye(groups, dtype=np.float32),
                               np.ones((cpg, cpg), np.float32)))
    args = [xp,
            w.astype(jnp.bfloat16),
            b.reshape(1, cout).astype(jnp.float32),
            gmat,
            gw.reshape(1, cout).astype(jnp.float32),
            gb.reshape(1, cout).astype(jnp.float32)]
    if final is not None:
        w1, b1 = final
        args += [w1.reshape(1, cout).astype(jnp.float32),
                 b1.reshape(1, 1).astype(jnp.float32)]
    return _dec_head_call(B, H, W, cin, cout, TH, groups, final is not None)(*args)


# ----------------------------------------------------------------------------
# Prototype depthwise correlation, max over objects, mean over iterations
# ----------------------------------------------------------------------------
def _corr_mean_kernel(feat_ref, proto_ref, out_ref, *, H, W, num_iter, num_obj, ksz):
    feat = feat_ref[0]                                      # (H+2, W+2, C)
    protos = proto_ref[0]                                   # (num_iter, num_obj*9, C)
    # Hoist the 9 shifted windows once; reused across all (iter, object) pairs.
    wins = [feat[dy:dy + H, dx:dx + W, :]
            for dy in range(ksz) for dx in range(ksz)]
    total = None
    for it in range(num_iter):
        best = None
        for j in range(num_obj):
            acc = None
            for t in range(ksz * ksz):
                idx = j * ksz * ksz + t
                wv = protos[it:it + 1, idx:idx + 1, :]       # (1, 1, C)
                term = wins[t] * wv
                acc = term if acc is None else acc + term
            best = acc if best is None else jnp.maximum(best, acc)
        total = best if total is None else total + best
    out_ref[0] = total * (1.0 / num_iter)


@functools.lru_cache(maxsize=None)
def _corr_call(B, H, W, C, n_iter, num_obj, ksz):
    nk = num_obj * ksz * ksz
    f = pl.pallas_call(
        functools.partial(_corr_mean_kernel, H=H, W=W,
                          num_iter=n_iter, num_obj=num_obj, ksz=ksz),
        out_shape=jax.ShapeDtypeStruct((B, H, W, C), jnp.float32),
        grid=(B,),
        in_specs=[pl.BlockSpec((1, H + 2, W + 2, C), lambda b: (b, 0, 0, 0)),
                  pl.BlockSpec((1, n_iter, nk, C), lambda b: (b, 0, 0, 0))],
        out_specs=pl.BlockSpec((1, H, W, C), lambda b: (b, 0, 0, 0)),
        compiler_params=pltpu.CompilerParams(
            dimension_semantics=("parallel",)),
    )
    return jax.jit(f)


def fused_correlation_mean(feat_nhwc, protos):
    """feat: (B,H,W,C); protos: (B, 3, 27, C) ordered (iter, obj*ky*kx, C)."""
    B, H, W, C = feat_nhwc.shape
    n_iter = protos.shape[1]
    feat_pad = jnp.pad(feat_nhwc, ((0, 0), (1, 1), (1, 1), (0, 0)))
    return _corr_call(B, H, W, C, n_iter, NUM_OBJECTS, KERNEL_DIM)(feat_pad, protos)


# ----------------------------------------------------------------------------
# Model building blocks (glue around the Pallas kernels)
# ----------------------------------------------------------------------------
def self_attention_block(x, p):
    # Attention(dim, num_heads, qkv_bias=True) -- no residual in the reference.
    B, N, C = x.shape
    qkv = linear(x, *p['qkv'], out_dtype=jnp.bfloat16)      # (B, N, 3C) lane-dense
    q, k, v = qkv[..., :C], qkv[..., C:2 * C], qkv[..., 2 * C:]
    o = sdpa(q, k, v, SCALE)                                # (B, N, C)
    return linear(o, *p['proj'])


def cross_attention(x, y, p):
    B, Nx, C = x.shape
    Ny = y.shape[1]
    if Ny == 1:
        # Softmax over a single key is identically 1, so the attention output
        # equals v for every query (exact); wq/wk and the sdpa call are skipped.
        v = linear(y, *p['wv'])                             # (B, 1, C)
        o = linear(v, *p['proj'])                           # (B, 1, C)
        return jnp.broadcast_to(o, (B, Nx, C))
    q = linear(x, *p['wq'], out_dtype=jnp.bfloat16)
    k = linear(y, *p['wk'], out_dtype=jnp.bfloat16)
    v = linear(y, *p['wv'], out_dtype=jnp.bfloat16)
    o = sdpa(q, k, v, SCALE)
    return linear(o, *p['proj'])


def cross_attention_block(x, y, p):
    # TODO(synk): CrossAttentionBlock is not defined in the reference file; this
    # follows the standard CounTR implementation (pre-norm cross-attn, then MLP).
    x = x + cross_attention(layer_norm(x, p['n1'], 1e-6), y, p)
    h = layer_norm(x, p['n2'], 1e-6)
    h = linear(h, *p['fc1'])
    h = jax.nn.gelu(h, approximate=False)
    h = linear(h, *p['fc2'])
    return x + h


def multihead_attention(q, k, v, p):
    # nn.MultiheadAttention semantics; inputs are seq-first (L, B, C).
    # q/k/v come from different tensors, so their projections cannot be fused.
    qh = jnp.transpose(linear(q, *p['wq'], out_dtype=jnp.bfloat16), (1, 0, 2))
    kh = jnp.transpose(linear(k, *p['wk'], out_dtype=jnp.bfloat16), (1, 0, 2))
    vh = jnp.transpose(linear(v, *p['wv'], out_dtype=jnp.bfloat16), (1, 0, 2))
    o = sdpa(qh, kh, vh, SCALE)                             # (B, Lq, C)
    o = jnp.transpose(o, (1, 0, 2))                         # (Lq, B, C)
    return linear(o, *p['out'])


def iterative_adaptation(tgt, memory, pos_emb, query_pos_emb, p):
    # IterativeAdaptationModule: 3 layers, zero_shot=True, norm_first=True, dropout=0.
    outs = []
    out = tgt                                               # (1, B, C) initially
    for lp in p['layers']:
        tn = layer_norm(out, lp['n2'], 1e-5)
        attn_out = multihead_attention(tn + query_pos_emb, memory + pos_emb, memory, lp)
        out = out + attn_out                                # broadcasts to (27, B, C)
        tn = layer_norm(out, lp['n3'], 1e-5)
        h = linear(tn, *lp['mlp1'])
        h = jax.nn.gelu(h, approximate=False)
        h = linear(h, *lp['mlp2'])
        out = out + h
        outs.append(layer_norm(out, p['norm'], 1e-5))
    return jnp.stack(outs)                                  # (3, 27, B, C)


def positional_encodings_fixed(bs, h, w, emb_dim=EMB, temperature=10000.0):
    half = emb_dim // 2
    i = jnp.arange(half, dtype=jnp.float32)
    temp = temperature ** (2.0 * jnp.floor(i / 2.0) / half)
    y_pos = jnp.arange(1, h + 1, dtype=jnp.float32)[:, None, None]
    x_pos = jnp.arange(1, w + 1, dtype=jnp.float32)[None, :, None]

    def enc(pos):
        e = jnp.broadcast_to(pos, (h, w, 1)) / temp          # (h, w, half)
        inter = jnp.stack([jnp.sin(e[..., 0::2]), jnp.cos(e[..., 1::2])], axis=-1)
        return inter.reshape(h, w, half)

    pos = jnp.concatenate([enc(y_pos), enc(x_pos)], axis=-1)  # (h, w, emb)
    pos = jnp.broadcast_to(pos[None], (bs, h, w, emb_dim))
    return jnp.transpose(pos, (0, 3, 1, 2))                   # (bs, emb, h, w)


def get_2d_sincos_pos_embed(embed_dim, grid_size):
    grid_h = np.arange(grid_size, dtype=np.float32)
    grid_w = np.arange(grid_size, dtype=np.float32)
    grid = np.meshgrid(grid_w, grid_h)
    grid = np.stack(grid, axis=0).reshape(2, 1, grid_size, grid_size)

    def emb_1d(dim, pos):
        omega = np.arange(dim // 2, dtype=np.float64) / (dim / 2.0)
        omega = 1.0 / (10000 ** omega)
        out = np.einsum('m,d->md', pos.reshape(-1), omega)
        return np.concatenate([np.sin(out), np.cos(out)], axis=1)

    emb_h = emb_1d(embed_dim // 2, grid[0])
    emb_w = emb_1d(embed_dim // 2, grid[1])
    return np.concatenate([emb_h, emb_w], axis=1).astype(np.float32)


def resize_bilinear(x, size):
    B, H, W, C = x.shape
    return jax.image.resize(x, (B, size, size, C), method='bilinear')


# ----------------------------------------------------------------------------
# CountingNetwork forward pieces
# ----------------------------------------------------------------------------
def forward_fim(img_tokens, txt_tokens, P):
    B = img_tokens.shape[0]
    x = img_tokens + P['fim_pos_embed']
    for bp in P['fim_blocks']:
        x = cross_attention_block(x, txt_tokens, bp)

    transposed = jnp.transpose(txt_tokens, (1, 0, 2))                    # (1, B, C)
    pos_emb = positional_encodings_fixed(B, GRID, GRID).reshape(B, EMB, NUM_TOKENS)
    pos_emb = jnp.transpose(pos_emb, (2, 0, 1))                          # (hw, B, C)
    qpe = positional_encodings_fixed(B, KERNEL_DIM, KERNEL_DIM).reshape(B, EMB, 9)
    qpe = jnp.tile(jnp.transpose(qpe, (2, 0, 1)), (NUM_OBJECTS, 1, 1))   # (27, B, C)

    memory = jnp.transpose(x, (1, 0, 2))                                 # (hw, B, C)
    all_protos = iterative_adaptation(transposed, memory, pos_emb, qpe, P['iter'])

    feat_nhwc = x.reshape(B, GRID, GRID, EMB)
    protos = jnp.transpose(all_protos, (2, 0, 1, 3))                     # (B, 3, 27, C)
    mean_resp = fused_correlation_mean(feat_nhwc, protos)                # (B,H,W,C)
    # TODO(synk): BatchNorm2d applied in eval mode with default running stats
    # (running_mean=0, running_var=1, weight=1, bias=0).
    mean_resp = mean_resp / jnp.sqrt(1.0 + 1e-5)
    fim_out = layer_norm(x, P['fim_norm'], 1e-6)
    return fim_out, mean_resp                                            # resp in NHWC


def forward_decoder(fim_tokens, resp_nhwc, P):
    B, hw, C = fim_tokens.shape
    h = int(math.isqrt(hw))
    x = fim_tokens.reshape(B, h, h, C) + resp_nhwc
    x = resize_bilinear(x, DEC0)
    for idx in range(4):
        hp = P['heads'][idx]
        final = hp['conv1x1'] if idx == 3 else None
        size_out = x.shape[1] * 2
        # Fused conv3x3 + GroupNorm + ReLU (+ final 1x1 projection for head 3).
        x = dec_head(x, hp['conv'], hp['gn'], final=final)
        if idx == 3:
            x = jax.image.resize(x, (B, size_out, size_out), method='bilinear')
        else:
            x = resize_bilinear(x, size_out)
    return x                                   # (B, DEC0*16, DEC0*16)


def counting_network_forward(img_tokens, txt_feats, P):
    # TODO(synk): the frozen open_clip ViT-B/16 image/text encoders have no clean
    # Pallas equivalent; their token outputs are taken directly as inputs.
    txt_tokens = txt_feats[:, None, :]                 # (B, 1, C)
    img_tokens = self_attention_block(img_tokens, P['atte'])
    fim_out, resp = forward_fim(img_tokens, txt_tokens, P)
    return forward_decoder(fim_out, resp, P)


# ----------------------------------------------------------------------------
# Deterministic parameter init
# ----------------------------------------------------------------------------
def init_params(key):
    keys = iter(jax.random.split(key, 128))

    def dense(din, dout, std=0.02):
        return (jax.random.normal(next(keys), (din, dout), jnp.float32) * std,
                jnp.zeros((dout,), jnp.float32))

    def conv3p(cin, cout, std=0.05):
        return (jax.random.normal(next(keys), (3, 3, cin, cout), jnp.float32) * std,
                jnp.zeros((cout,), jnp.float32))

    def ln(c):
        return (jnp.ones((c,), jnp.float32), jnp.zeros((c,), jnp.float32))

    P = {}
    P['atte'] = {'qkv': dense(EMB, 3 * EMB), 'proj': dense(EMB, EMB)}
    P['fim_pos_embed'] = jnp.asarray(get_2d_sincos_pos_embed(EMB, GRID))[None]
    P['fim_blocks'] = []
    for _ in range(2):
        # wq/wk exist in the module but do not affect the output when the text
        # sequence length is 1 (softmax over a single key).
        P['fim_blocks'].append({
            'n1': ln(EMB), 'wq': dense(EMB, EMB), 'wk': dense(EMB, EMB),
            'wv': dense(EMB, EMB), 'proj': dense(EMB, EMB), 'n2': ln(EMB),
            'fc1': dense(EMB, MLP_RATIO * EMB), 'fc2': dense(MLP_RATIO * EMB, EMB)})
    P['fim_norm'] = ln(EMB)
    layers = []
    for _ in range(3):
        layers.append({'n2': ln(EMB), 'n3': ln(EMB),
                       'wq': dense(EMB, EMB), 'wk': dense(EMB, EMB),
                       'wv': dense(EMB, EMB), 'out': dense(EMB, EMB),
                       'mlp1': dense(EMB, ITER_MLP_FACTOR * EMB),
                       'mlp2': dense(ITER_MLP_FACTOR * EMB, EMB)})
    P['iter'] = {'layers': layers, 'norm': ln(EMB)}
    heads = [{'conv': conv3p(EMB, DEC_CH), 'gn': ln(DEC_CH)},
             {'conv': conv3p(DEC_CH, DEC_CH), 'gn': ln(DEC_CH)},
             {'conv': conv3p(DEC_CH, DEC_CH), 'gn': ln(DEC_CH)},
             {'conv': conv3p(DEC_CH, DEC_CH), 'gn': ln(DEC_CH),
              'conv1x1': dense(DEC_CH, 1, std=0.05)}]
    P['heads'] = heads
    return P


# ----------------------------------------------------------------------------
if __name__ == "__main__":
    key = jax.random.PRNGKey(0)
    k_img, k_txt, k_param = jax.random.split(key, 3)
    B = 2
    # Stand-ins for the frozen CLIP encoder outputs.
    img_tokens = jax.random.normal(k_img, (B, NUM_TOKENS, EMB), jnp.float32)
    txt_feats = jax.random.normal(k_txt, (B, EMB), jnp.float32)

    params = init_params(k_param)
    fwd = jax.jit(counting_network_forward)
    pred = jax.block_until_ready(fwd(img_tokens, txt_feats, params))
    out_size = DEC0 * 16
    assert pred.shape == (B, out_size, out_size), pred.shape
    assert bool(jnp.all(jnp.isfinite(pred)))
    print("KERNEL_OK")
</pallas_src>

<mosaic_0001>
module attributes {stable_mosaic.version = 11 : i64} {
  func.func @_linear_kernel(%arg0: i32, %arg1: i32, %arg2: memref<128x128xbf16, #tpu.memory_space<vmem>>, %arg3: memref<128x384xbf16, #tpu.memory_space<vmem>>, %arg4: memref<1x384xf32, #tpu.memory_space<vmem>>, %arg5: memref<128x384xbf16, #tpu.memory_space<vmem>>) attributes {dimension_semantics = [#tpu.dimension_semantics<parallel>, #tpu.dimension_semantics<parallel>], iteration_bounds = array<i64: 1, 1>, scalar_prefetch = 0 : i64, scratch_operands = 0 : i64, tpu.core_type = #tpu.core_type<tc>, window_params = [{transform_indices = @transform_0, window_bounds = array<i64: 128, 128>}, {transform_indices = @transform_1, window_bounds = array<i64: 128, 384>}, {transform_indices = @transform_2, window_bounds = array<i64: 1, 384>}, {transform_indices = @transform_3, window_bounds = array<i64: 128, 384>}]} {
    %c0 = arith.constant 0 : index
    %c0_0 = arith.constant 0 : index
    %0 = vector.load %arg2[%c0, %c0_0] : memref<128x128xbf16, #tpu.memory_space<vmem>>, vector<128x128xbf16>
    %c0_1 = arith.constant 0 : index
    %c0_2 = arith.constant 0 : index
    %1 = vector.load %arg3[%c0_1, %c0_2] : memref<128x384xbf16, #tpu.memory_space<vmem>>, vector<128x384xbf16>
    %cst = arith.constant dense<0.000000e+00> : vector<128x384xf32>
    %2 = tpu.matmul %0, %1, %cst {dimension_numbers = #tpu.dot_dimension_numbers<[1], [0], [0], [1], [0, 0, 1, 1], [], []>} : vector<128x128xbf16>, vector<128x384xbf16>, vector<128x384xf32> -> vector<128x384xf32>
    %c0_3 = arith.constant 0 : index
    %c0_4 = arith.constant 0 : index
    %3 = vector.load %arg4[%c0_3, %c0_4] : memref<1x384xf32, #tpu.memory_space<vmem>>, vector<1x384xf32>
    %4 = vector.broadcast %3 : vector<1x384xf32> to vector<128x384xf32>
    %5 = arith.addf %2, %4 : vector<128x384xf32>
    %6 = arith.truncf %5 : vector<128x384xf32> to vector<128x384xbf16>
    %c0_5 = arith.constant 0 : index
    %c0_6 = arith.constant 0 : index
    %7 = vector.load %arg5[%c0_5, %c0_6] : memref<128x384xbf16, #tpu.memory_space<vmem>>, vector<128x384xbf16>
    tpu.vector_store %arg5[%c0_5, %c0_6], %6 {strides = array<i32>} : memref<128x384xbf16, #tpu.memory_space<vmem>>, vector<128x384xbf16>,
    return
  }
  func.func @transform_0(%arg0: i32, %arg1: i32) -> (i32, i32) {
    %c0_i32 = arith.constant 0 : i32
    %c0_i32_0 = arith.constant 0 : i32
    return %arg0, %c0_i32 : i32, i32
  }
  func.func @transform_1(%arg0: i32, %arg1: i32) -> (i32, i32) {
    %c0_i32 = arith.constant 0 : i32
    %c0_i32_0 = arith.constant 0 : i32
    return %c0_i32, %arg1 : i32, i32
  }
  func.func @transform_2(%arg0: i32, %arg1: i32) -> (i32, i32) {
    %c0_i32 = arith.constant 0 : i32
    %c0_i32_0 = arith.constant 0 : i32
    return %c0_i32, %arg1 : i32, i32
  }
  func.func @transform_3(%arg0: i32, %arg1: i32) -> (i32, i32) {
    %c0_i32 = arith.constant 0 : i32
    return %arg0, %arg1 : i32, i32
  }
}

</mosaic_0001>

<llo_original>
// kernel: tpu_custom_call.1
$region0: #{tpu_custom_call.1}
  #allocation0 [shape = 'u32[]', space=smem, size = 0x4, offset = 0x4, fixed_abs, tag = 'smem constant byte address 0x4 - core index']
  #allocation1 [shape = 'u32[72,128]{1,0:T(1,128)}', space=vmem, size = 0x9000, scoped, tag = 'internal scratch']
  %s0 = inlined_call_operand.hbm [shape: bf16[128,128], index: 0, kind: input, shape index: {}]
  %s1 = inlined_call_operand.hbm [shape: bf16[128,384], index: 1, kind: input, shape index: {}]
  %s2 = inlined_call_operand.hbm [shape: f32[1,384], index: 2, kind: input, shape index: {}]
  %s3 = inlined_call_operand.hbm [shape: bf16[128,384], index: 3, kind: output, shape index: {}]
  %s4 = sld [smem:[#allocation0]]
  $region34: #{tpu_custom_call.1} parent=0
    _
  %s6 = ssub.s32 1, %s4
  %s7 = scalar_select 0, %s6, %s4
  $region1: #{tpu_custom_call.1} parent=0
    #allocation2 [shape = 'u8[32768]{0}', space=vmem, size = 0x8000, scoped, tag = 'input window, operand 0, single buffered']
    #allocation3 [shape = 's32[1]{0}', space=sflag, size = 0x4, scoped, tag = 'scoped memory for tpu_custom_call.1']
    #allocation4 [shape = 's32[1]{0}', space=sflag, size = 0x4, scoped, tag = 'scoped memory for tpu_custom_call.1']
    #allocation5 [shape = 'u8[98304]{0}', space=vmem, size = 0x18000, scoped, tag = 'input window, operand 1, single buffered']
    #allocation6 [shape = 's32[1]{0}', space=sflag, size = 0x4, scoped, tag = 'scoped memory for tpu_custom_call.1']
    #allocation7 [shape = 'u8[1536]{0}', space=vmem, size = 0x800, scoped, tag = 'input window, operand 2, single buffered']
    #allocation8 [shape = 'u8[98304]{0}', space=vmem, size = 0x18000, scoped, tag = 'output window, operand 0, single buffered']
    %8 = vsyncpa [#allocation3], 0
    %9 = vsyncpa [#allocation6], 0
    %10 = vsyncpa [#allocation4], 0
    // Predicated region
    $region2: #{tpu_custom_call.1} parent=1 // pred_check
      _
    $region3: #{tpu_custom_call.1} parent=1 // pred_check_branch
      %12 = sbr.rel (0) target = $region5
    $region4: #{tpu_custom_call.1} parent=1 // pred_region
      %14 = vsyncadd [#allocation3], 0
      %s15 = sshll.u32 %s0, 4
      %s16 = int_to_ptr.hbm [resolvable:$true] %s15
      %s17 = sshll.u32 [#allocation2], 4
      %s18 = int_to_ptr.vmem [resolvable:$true] %s17
      %23 = dma.hbm_to_vmem [thread:$0]  %s16, 1024, %s18, [#allocation3], 64, 64, 4
    $region5: #{tpu_custom_call.1} parent=1 // pred_fallthru
      _
    // Predicated region
    $region6: #{tpu_custom_call.1} parent=1 // pred_check
      _
    $region7: #{tpu_custom_call.1} parent=1 // pred_check_branch
      %25 = sbr.rel (0) target = $region9
    $region8: #{tpu_custom_call.1} parent=1 // pred_region
      %27 = vsyncadd [#allocation6], 0
      %s28 = sshll.u32 %s1, 4
      %s29 = int_to_ptr.hbm [resolvable:$true] %s28
      %s30 = sshll.u32 [#allocation5], 4
      %s31 = int_to_ptr.vmem [resolvable:$true] %s30
      %36 = dma.hbm_to_vmem [thread:$0]  %s29, 3072, %s31, [#allocation6], 192, 192, 12
    $region9: #{tpu_custom_call.1} parent=1 // pred_fallthru
      _
    // Predicated region
    $region10: #{tpu_custom_call.1} parent=1 // pred_check
      _
    $region11: #{tpu_custom_call.1} parent=1 // pred_check_branch
      %38 = sbr.rel (0) target = $region13
    $region12: #{tpu_custom_call.1} parent=1 // pred_region
      %40 = vsyncadd [#allocation6], 0
      %s42 = sshll.u32 %s2, 4
      %s43 = int_to_ptr.hbm [resolvable:$true] %s42
      %s44 = sshll.u32 [#allocation7], 4
      %s45 = int_to_ptr.vmem [resolvable:$true] %s44
      %47 = dma.hbm_to_vmem [thread:$0]  %s43, 48, %s45, [#allocation6]
    $region13: #{tpu_custom_call.1} parent=1 // pred_fallthru
      _
    // Predicated region
    $region14: #{tpu_custom_call.1} parent=1 // pred_check
      _
    $region15: #{tpu_custom_call.1} parent=1 // pred_check_branch
      %49 = sbr.rel (0) target = $region17
    $region16: #{tpu_custom_call.1} parent=1 // pred_region
      %51 = dma.done [#allocation3], 1024
    $region17: #{tpu_custom_call.1} parent=1 // pred_fallthru
      _
    // Predicated region
    $region18: #{tpu_custom_call.1} parent=1 // pred_check
      _
    $region19: #{tpu_custom_call.1} parent=1 // pred_check_branch
      %53 = sbr.rel (0) target = $region21
    $region20: #{tpu_custom_call.1} parent=1 // pred_region
      %55 = dma.done [#allocation6], 3072
    $region21: #{tpu_custom_call.1} parent=1 // pred_fallthru
      _
    // Predicated region
    $region22: #{tpu_custom_call.1} parent=1 // pred_check
      _
    $region23: #{tpu_custom_call.1} parent=1 // pred_check_branch
      %57 = sbr.rel (0) target = $region25
    $region24: #{tpu_custom_call.1} parent=1 // pred_region
      %59 = dma.done [#allocation6], 48
    $region25: #{tpu_custom_call.1} parent=1 // pred_fallthru
      _
    %v60 = vld [vmem:[#allocation2] sm:$0xf]
    %v61 = vld [vmem:[#allocation2 + $0x4] sm:$0xf]
    %v62 = vld [vmem:[#allocation2 + $0x8] sm:$0xf]
    %v63 = vld [vmem:[#allocation2 + $0xc] sm:$0xf]
    %v64 = vld [vmem:[#allocation2 + $0x10] sm:$0xf]
    %v65 = vld [vmem:[#allocation2 + $0x14] sm:$0xf]
    %v66 = vld [vmem:[#allocation2 + $0x18] sm:$0xf]
    %v67 = vld [vmem:[#allocation2 + $0x1c] sm:$0xf]
    %v68 = vld [vmem:[#allocation2 + $0x20] sm:$0xf]
    %v69 = vld [vmem:[#allocation2 + $0x24] sm:$0xf]
    %v70 = vld [vmem:[#allocation2 + $0x28] sm:$0xf]
    %v71 = vld [vmem:[#allocation2 + $0x2c] sm:$0xf]
    %v72 = vld [vmem:[#allocation2 + $0x30] sm:$0xf]
    %v73 = vld [vmem:[#allocation2 + $0x34] sm:$0xf]
    %v74 = vld [vmem:[#allocation2 + $0x38] sm:$0xf]
    %v75 = vld [vmem:[#allocation2 + $0x3c] sm:$0xf]
    %v76 = vld [vmem:[#allocation5] sm:$0xff]
    %v77 = vld [vmem:[#allocation5 + $0x8] sm:$0xf]
    %v78 = vld [vmem:[#allocation5 + $0xc] sm:$0xff]
    %v79 = vld [vmem:[#allocation5 + $0x14] sm:$0xf]
    %v80 = vld [vmem:[#allocation5 + $0x18] sm:$0xff]
    %v81 = vld [vmem:[#allocation5 + $0x20] sm:$0xf]
    %v82 = vld [vmem:[#allocation5 + $0x24] sm:$0xff]
    %v83 = vld [vmem:[#allocation5 + $0x2c] sm:$0xf]
    %v84 = vld [vmem:[#allocation5 + $0x30] sm:$0xff]
    %v85 = vld [vmem:[#allocation5 + $0x38] sm:$0xf]
    %v86 = vld [vmem:[#allocation5 + $0x3c] sm:$0xff]
    %v87 = vld [vmem:[#allocation5 + $0x44] sm:$0xf]
    %v88 = vld [vmem:[#allocation5 + $0x48] sm:$0xff]
    %v89 = vld [vmem:[#allocation5 + $0x50] sm:$0xf]
    %v90 = vld [vmem:[#allocation5 + $0x54] sm:$0xff]
    %v91 = vld [vmem:[#allocation5 + $0x5c] sm:$0xf]
    %v92 = vld [vmem:[#allocation5 + $0x60] sm:$0xff]
    %v93 = vld [vmem:[#allocation5 + $0x68] sm:$0xf]
    %v94 = vld [vmem:[#allocation5 + $0x6c] sm:$0xff]
    %v95 = vld [vmem:[#allocation5 + $0x74] sm:$0xf]
    %v96 = vld [vmem:[#allocation5 + $0x78] sm:$0xff]
    %v97 = vld [vmem:[#allocation5 + $0x80] sm:$0xf]
    %v98 = vld [vmem:[#allocation5 + $0x84] sm:$0xff]
    %v99 = vld [vmem:[#allocation5 + $0x8c] sm:$0xf]
    %v100 = vld [vmem:[#allocation5 + $0x90] sm:$0xff]
    %v101 = vld [vmem:[#allocation5 + $0x98] sm:$0xf]
    %v102 = vld [vmem:[#allocation5 + $0x9c] sm:$0xff]
    %v103 = vld [vmem:[#allocation5 + $0xa4] sm:$0xf]
    %v104 = vld [vmem:[#allocation5 + $0xa8] sm:$0xff]
    %v105 = vld [vmem:[#allocation5 + $0xb0] sm:$0xf]
    %v106 = vld [vmem:[#allocation5 + $0xb4] sm:$0xff]
    %v107 = vld [vmem:[#allocation5 + $0xbc] sm:$0xf]
    %v108 = vld [vmem:[#allocation7] sm:$0x7]
    %v110 = vperm.slane %v108, 0
    %v111 = vperm.slane %v108, 1
    %v112 = vperm.slane %v108, 2
    %v132 = vunpack.c.l.b16 %v60
    %v133 = vunpack.c.l.b16 %v61
    %v134 = vunpack.c.l.b16 %v62
    %v135 = vunpack.c.l.b16 %v63
    %v136 = vunpack.c.l.b16 %v64
    %v137 = vunpack.c.l.b16 %v65
    %v138 = vunpack.c.l.b16 %v66
    %v139 = vunpack.c.l.b16 %v67
    %v140 = vunpack.c.l.b16 %v68
    %v141 = vunpack.c.l.b16 %v69
    %v142 = vunpack.c.l.b16 %v70
    %v143 = vunpack.c.l.b16 %v71
    %v144 = vunpack.c.l.b16 %v72
    %v145 = vunpack.c.l.b16 %v73
    %v146 = vunpack.c.l.b16 %v74
    %v147 = vunpack.c.l.b16 %v75
    %v148 = vpack.c.b16 %v133, %v132
    %v149 = vpack.c.b16 %v135, %v134
    %v150 = vpack.c.b16 %v137, %v136
    %v151 = vpack.c.b16 %v139, %v138
    %v152 = vpack.c.b16 %v141, %v140
    %v153 = vpack.c.b16 %v143, %v142
    %v154 = vpack.c.b16 %v145, %v144
    %v155 = vpack.c.b16 %v147, %v146
    %v196 = vunpack.c.l.b16 %v76
    %v197 = vunpack.c.h.b16 %v76
    %v198 = vunpack.c.l.b16 %v77
    %v199 = vunpack.c.l.b16 %v78
    %v200 = vunpack.c.h.b16 %v78
    %v201 = vunpack.c.l.b16 %v79
    %v202 = vunpack.c.l.b16 %v80
    %v203 = vunpack.c.h.b16 %v80
    %v204 = vunpack.c.l.b16 %v81
    %v205 = vunpack.c.l.b16 %v82
    %v206 = vunpack.c.h.b16 %v82
    %v207 = vunpack.c.l.b16 %v83
    %v208 = vunpack.c.l.b16 %v84
    %v209 = vunpack.c.h.b16 %v84
    %v210 = vunpack.c.l.b16 %v85
    %v211 = vunpack.c.l.b16 %v86
    %v212 = vunpack.c.h.b16 %v86
    %v213 = vunpack.c.l.b16 %v87
    %v214 = vunpack.c.l.b16 %v88
    %v215 = vunpack.c.h.b16 %v88
    %v216 = vunpack.c.l.b16 %v89
    %v217 = vunpack.c.l.b16 %v90
    %v218 = vunpack.c.h.b16 %v90
    %v219 = vunpack.c.l.b16 %v91
    %v220 = vunpack.c.l.b16 %v92
    %v221 = vunpack.c.h.b16 %v92
    %v222 = vunpack.c.l.b16 %v93
    %v223 = vunpack.c.l.b16 %v94
    %v224 = vunpack.c.h.b16 %v94
    %v225 = vunpack.c.l.b16 %v95
    %v226 = vunpack.c.l.b16 %v96
    %v227 = vunpack.c.h.b16 %v96
    %v228 = vunpack.c.l.b16 %v97
    %v229 = vunpack.c.l.b16 %v98
    %v230 = vunpack.c.h.b16 %v98
    %v231 = vunpack.c.l.b16 %v99
    %v232 = vunpack.c.l.b16 %v100
    %v233 = vunpack.c.h.b16 %v100
    %v234 = vunpack.c.l.b16 %v101
    %v235 = vunpack.c.l.b16 %v102
    %v236 = vunpack.c.h.b16 %v102
    %v237 = vunpack.c.l.b16 %v103
    %v238 = vunpack.c.l.b16 %v104
    %v239 = vunpack.c.h.b16 %v104
    %v240 = vunpack.c.l.b16 %v105
    %v241 = vunpack.c.l.b16 %v106
    %v242 = vunpack.c.h.b16 %v106
    %v243 = vunpack.c.l.b16 %v107
    %v244 = vpack.c.b16 %v199, %v196
    %v245 = vpack.c.b16 %v200, %v197
    %v246 = vpack.c.b16 %v201, %v198
    %v247 = vpack.c.b16 %v205, %v202
    %v248 = vpack.c.b16 %v206, %v203
    %v249 = vpack.c.b16 %v207, %v204
    %v250 = vpack.c.b16 %v211, %v208
    %v251 = vpack.c.b16 %v212, %v209
    %v252 = vpack.c.b16 %v213, %v210
    %v253 = vpack.c.b16 %v217, %v214
    %v254 = vpack.c.b16 %v218, %v215
    %v255 = vpack.c.b16 %v219, %v216
    %v256 = vpack.c.b16 %v223, %v220
    %v257 = vpack.c.b16 %v224, %v221
    %v258 = vpack.c.b16 %v225, %v222
    %v259 = vpack.c.b16 %v229, %v226
    %v260 = vpack.c.b16 %v230, %v227
    %v261 = vpack.c.b16 %v231, %v228
    %v262 = vpack.c.b16 %v235, %v232
    %v263 = vpack.c.b16 %v236, %v233
    %v264 = vpack.c.b16 %v237, %v234
    %v265 = vpack.c.b16 %v241, %v238
    %v266 = vpack.c.b16 %v242, %v239
    %v267 = vpack.c.b16 %v243, %v240
    %292 = vmatpush.bf16.msra.mxu0 %v265
    %293 = vmatpush.bf16.msra.mxu0 %v262
    %294 = vmatpush.bf16.msra.mxu0 %v259
    %295 = vmatpush.bf16.msra.mxu0 %v256
    %296 = vmatpush.bf16.msra.mxu0 %v253
    %297 = vmatpush.bf16.msra.mxu0 %v250
    %298 = vmatpush.bf16.msra.mxu0 %v247
    %299 = vmatpush.bf16.msra.mxu0 %v244
    %300 = vmatmul.bf16.gmra.mxu0 %v148
    %v301 = vpop.f32.mrf.mxu0
    %v302 = vadd.f32 %v110, %v301
    %v303 = vpop.f32.mrf.mxu0
    %v304 = vadd.f32 %v110, %v303
    %305 = vmatmul.bf16.gmra.mxu0 %v149
    %v306 = vpop.f32.mrf.mxu0
    %v307 = vadd.f32 %v110, %v306
    %v308 = vpop.f32.mrf.mxu0
    %v309 = vadd.f32 %v110, %v308
    %310 = vmatmul.bf16.gmra.mxu0 %v150
    %v311 = vpop.f32.mrf.mxu0
    %v312 = vadd.f32 %v110, %v311
    %v313 = vpop.f32.mrf.mxu0
    %v314 = vadd.f32 %v110, %v313
    %315 = vmatmul.bf16.gmra.mxu0 %v151
    %v316 = vpop.f32.mrf.mxu0
    %v317 = vadd.f32 %v110, %v316
    %v318 = vpop.f32.mrf.mxu0
    %v319 = vadd.f32 %v110, %v318
    %320 = vmatmul.bf16.gmra.mxu0 %v152
    %v321 = vpop.f32.mrf.mxu0
    %v322 = vadd.f32 %v110, %v321
    %v323 = vpop.f32.mrf.mxu0
    %v324 = vadd.f32 %v110, %v323
    %325 = vmatmul.bf16.gmra.mxu0 %v153
    %v326 = vpop.f32.mrf.mxu0
    %v327 = vadd.f32 %v110, %v326
    %v328 = vpop.f32.mrf.mxu0
    %v329 = vadd.f32 %v110, %v328
    %330 = vmatmul.bf16.gmra.mxu0 %v154
    %v331 = vpop.f32.mrf.mxu0
    %v332 = vadd.f32 %v110, %v331
    %v333 = vpop.f32.mrf.mxu0
    %v334 = vadd.f32 %v110, %v333
    %335 = vmatmul.bf16.gmra.mxu0 %v155
    %v336 = vpop.f32.mrf.mxu0
    %v337 = vadd.f32 %v110, %v336
    %v338 = vpop.f32.mrf.mxu0
    %v339 = vadd.f32 %v110, %v338
    %340 = vdwg.mxu0
    %341 = vmatpush.bf16.msra.mxu0 %v266
    %342 = vmatpush.bf16.msra.mxu0 %v263
    %343 = vmatpush.bf16.msra.mxu0 %v260
    %344 = vmatpush.bf16.msra.mxu0 %v257
    %345 = vmatpush.bf16.msra.mxu0 %v254
    %346 = vmatpush.bf16.msra.mxu0 %v251
    %347 = vmatpush.bf16.msra.mxu0 %v248
    %348 = vmatpush.bf16.msra.mxu0 %v245
    %349 = vmatmul.bf16.gmra.mxu0 %v148
    %v350 = vpop.f32.mrf.mxu0
    %v351 = vadd.f32 %v111, %v350
    %v352 = vpop.f32.mrf.mxu0
    %v353 = vadd.f32 %v111, %v352
    %354 = vmatmul.bf16.gmra.mxu0 %v149
    %v355 = vpop.f32.mrf.mxu0
    %v356 = vadd.f32 %v111, %v355
    %v357 = vpop.f32.mrf.mxu0
    %v358 = vadd.f32 %v111, %v357
    %359 = vmatmul.bf16.gmra.mxu0 %v150
    %v360 = vpop.f32.mrf.mxu0
    %v361 = vadd.f32 %v111, %v360
    %v362 = vpop.f32.mrf.mxu0
    %v363 = vadd.f32 %v111, %v362
    %364 = vmatmul.bf16.gmra.mxu0 %v151
    %v365 = vpop.f32.mrf.mxu0
    %v366 = vadd.f32 %v111, %v365
    %v367 = vpop.f32.mrf.mxu0
    %v368 = vadd.f32 %v111, %v367
    %369 = vmatmul.bf16.gmra.mxu0 %v152
    %v370 = vpop.f32.mrf.mxu0
    %v371 = vadd.f32 %v111, %v370
    %v372 = vpop.f32.mrf.mxu0
    %v373 = vadd.f32 %v111, %v372
    %374 = vmatmul.bf16.gmra.mxu0 %v153
    %v375 = vpop.f32.mrf.mxu0
    %v376 = vadd.f32 %v111, %v375
    %v377 = vpop.f32.mrf.mxu0
    %v378 = vadd.f32 %v111, %v377
    %379 = vmatmul.bf16.gmra.mxu0 %v154
    %v380 = vpop.f32.mrf.mxu0
    %v381 = vadd.f32 %v111, %v380
    %v382 = vpop.f32.mrf.mxu0
    %v383 = vadd.f32 %v111, %v382
    %384 = vmatmul.bf16.gmra.mxu0 %v155
    %v385 = vpop.f32.mrf.mxu0
    %v386 = vadd.f32 %v111, %v385
    %v387 = vpop.f32.mrf.mxu0
    %v388 = vadd.f32 %v111, %v387
    %389 = vdwg.mxu0
    %390 = vmatpush.bf16.msra.mxu0 %v267
    %391 = vmatpush.bf16.msra.mxu0 %v264
    %392 = vmatpush.bf16.msra.mxu0 %v261
    %393 = vmatpush.bf16.msra.mxu0 %v258
    %394 = vmatpush.bf16.msra.mxu0 %v255
    %395 = vmatpush.bf16.msra.mxu0 %v252
    %396 = vmatpush.bf16.msra.mxu0 %v249
    %397 = vmatpush.bf16.msra.mxu0 %v246
    %398 = vmatmul.bf16.gmra.mxu0 %v148
    %v399 = vpop.f32.mrf.mxu0
    %v400 = vadd.f32 %v112, %v399
    %v401 = vpop.f32.mrf.mxu0
    %v402 = vadd.f32 %v112, %v401
    %403 = vmatmul.bf16.gmra.mxu0 %v149
    %v404 = vpop.f32.mrf.mxu0
    %v405 = vadd.f32 %v112, %v404
    %v406 = vpop.f32.mrf.mxu0
    %v407 = vadd.f32 %v112, %v406
    %408 = vmatmul.bf16.gmra.mxu0 %v150
    %v409 = vpop.f32.mrf.mxu0
    %v410 = vadd.f32 %v112, %v409
    %v411 = vpop.f32.mrf.mxu0
    %v412 = vadd.f32 %v112, %v411
    %413 = vmatmul.bf16.gmra.mxu0 %v151
    %v414 = vpop.f32.mrf.mxu0
    %v415 = vadd.f32 %v112, %v414
    %v416 = vpop.f32.mrf.mxu0
    %v417 = vadd.f32 %v112, %v416
    %418 = vmatmul.bf16.gmra.mxu0 %v152
    %v419 = vpop.f32.mrf.mxu0
    %v420 = vadd.f32 %v112, %v419
    %v421 = vpop.f32.mrf.mxu0
    %v422 = vadd.f32 %v112, %v421
    %423 = vmatmul.bf16.gmra.mxu0 %v153
    %v424 = vpop.f32.mrf.mxu0
    %v425 = vadd.f32 %v112, %v424
    %v426 = vpop.f32.mrf.mxu0
    %v427 = vadd.f32 %v112, %v426
    %428 = vmatmul.bf16.gmra.mxu0 %v154
    %v429 = vpop.f32.mrf.mxu0
    %v430 = vadd.f32 %v112, %v429
    %v431 = vpop.f32.mrf.mxu0
    %v432 = vadd.f32 %v112, %v431
    %433 = vmatmul.bf16.gmra.mxu0 %v155
    %v434 = vpop.f32.mrf.mxu0
    %v435 = vadd.f32 %v112, %v434
    %v436 = vpop.f32.mrf.mxu0
    %v437 = vadd.f32 %v112, %v436
    %438 = vdwg.mxu0
    %v439 = vpack.c.bf16 %v351, %v302
    %v440 = vpack.c.bf16 %v400, %v400
    %v441 = vpack.c.bf16 %v353, %v304
    %v442 = vpack.c.bf16 %v402, %v402
    %v443 = vpack.c.bf16 %v356, %v307
    %v444 = vpack.c.bf16 %v405, %v405
    %v445 = vpack.c.bf16 %v358, %v309
    %v446 = vpack.c.bf16 %v407, %v407
    %v447 = vpack.c.bf16 %v361, %v312
    %v448 = vpack.c.bf16 %v410, %v410
    %v449 = vpack.c.bf16 %v363, %v314
    %v450 = vpack.c.bf16 %v412, %v412
    %v451 = vpack.c.bf16 %v366, %v317
    %v452 = vpack.c.bf16 %v415, %v415
    %v453 = vpack.c.bf16 %v368, %v319
    %v454 = vpack.c.bf16 %v417, %v417
    %v455 = vpack.c.bf16 %v371, %v322
    %v456 = vpack.c.bf16 %v420, %v420
    %v457 = vpack.c.bf16 %v373, %v324
    %v458 = vpack.c.bf16 %v422, %v422
    %v459 = vpack.c.bf16 %v376, %v327
    %v460 = vpack.c.bf16 %v425, %v425
    %v461 = vpack.c.bf16 %v378, %v329
    %v462 = vpack.c.bf16 %v427, %v427
    %v463 = vpack.c.bf16 %v381, %v332
    %v464 = vpack.c.bf16 %v430, %v430
    %v465 = vpack.c.bf16 %v383, %v334
    %v466 = vpack.c.bf16 %v432, %v432
    %v467 = vpack.c.bf16 %v386, %v337
    %v468 = vpack.c.bf16 %v435, %v435
    %v469 = vpack.c.bf16 %v388, %v339
    %v470 = vpack.c.bf16 %v437, %v437
    %471 = vst [vmem:[#allocation8] sm:$0xff] %v439
    %472 = vst [vmem:[#allocation8 + $0x8] sm:$0xf] %v440
    %473 = vst [vmem:[#allocation8 + $0xc] sm:$0xff] %v441
    %474 = vst [vmem:[#allocation8 + $0x14] sm:$0xf] %v442
    %475 = vst [vmem:[#allocation8 + $0x18] sm:$0xff] %v443
    %476 = vst [vmem:[#allocation8 + $0x20] sm:$0xf] %v444
    %477 = vst [vmem:[#allocation8 + $0x24] sm:$0xff] %v445
    %478 = vst [vmem:[#allocation8 + $0x2c] sm:$0xf] %v446
    %479 = vst [vmem:[#allocation8 + $0x30] sm:$0xff] %v447
    %480 = vst [vmem:[#allocation8 + $0x38] sm:$0xf] %v448
    %481 = vst [vmem:[#allocation8 + $0x3c] sm:$0xff] %v449
    %482 = vst [vmem:[#allocation8 + $0x44] sm:$0xf] %v450
    %483 = vst [vmem:[#allocation8 + $0x48] sm:$0xff] %v451
    %484 = vst [vmem:[#allocation8 + $0x50] sm:$0xf] %v452
    %485 = vst [vmem:[#allocation8 + $0x54] sm:$0xff] %v453
    %486 = vst [vmem:[#allocation8 + $0x5c] sm:$0xf] %v454
    %487 = vst [vmem:[#allocation8 + $0x60] sm:$0xff] %v455
    %488 = vst [vmem:[#allocation8 + $0x68] sm:$0xf] %v456
    %489 = vst [vmem:[#allocation8 + $0x6c] sm:$0xff] %v457
    %490 = vst [vmem:[#allocation8 + $0x74] sm:$0xf] %v458
    %491 = vst [vmem:[#allocation8 + $0x78] sm:$0xff] %v459
    %492 = vst [vmem:[#allocation8 + $0x80] sm:$0xf] %v460
    %493 = vst [vmem:[#allocation8 + $0x84] sm:$0xff] %v461
    %494 = vst [vmem:[#allocation8 + $0x8c] sm:$0xf] %v462
    %495 = vst [vmem:[#allocation8 + $0x90] sm:$0xff] %v463
    %496 = vst [vmem:[#allocation8 + $0x98] sm:$0xf] %v464
    %497 = vst [vmem:[#allocation8 + $0x9c] sm:$0xff] %v465
    %498 = vst [vmem:[#allocation8 + $0xa4] sm:$0xf] %v466
    %499 = vst [vmem:[#allocation8 + $0xa8] sm:$0xff] %v467
    %500 = vst [vmem:[#allocation8 + $0xb0] sm:$0xf] %v468
    %501 = vst [vmem:[#allocation8 + $0xb4] sm:$0xff] %v469
    %502 = vst [vmem:[#allocation8 + $0xbc] sm:$0xf] %v470
    // Predicated region
    $region26: #{tpu_custom_call.1} parent=1 // pred_check
      _
    $region27: #{tpu_custom_call.1} parent=1 // pred_check_branch
      %504 = sbr.rel (0) target = $region29
    $region28: #{tpu_custom_call.1} parent=1 // pred_region
      %506 = vsyncadd [#allocation4], 0
      %s507 = sshll.u32 [#allocation8], 4
      %s508 = int_to_ptr.vmem [resolvable:$true] %s507
      %s509 = sshll.u32 %s3, 4
      %s510 = int_to_ptr.hbm [resolvable:$true] %s509
      %515 = dma.vmem_to_hbm [thread:$0]  %s508, 3072, %s510, [#allocation4], 192, 192, 12
    $region29: #{tpu_custom_call.1} parent=1 // pred_fallthru
      _
    // Predicated region
    $region30: #{tpu_custom_call.1} parent=1 // pred_check
      _
    $region31: #{tpu_custom_call.1} parent=1 // pred_check_branch
      %517 = sbr.rel (0) target = $region33
    $region32: #{tpu_custom_call.1} parent=1 // pred_region
      %519 = dma.done [#allocation4], 3072
    $region33: #{tpu_custom_call.1} parent=1 // pred_fallthru
      _
    %520 = vsyncpa [#allocation3], 1
    %521 = vsyncpa [#allocation6], 1
    %522 = vsyncpa [#allocation4], 1

</llo_original>
